<compile_context>
chip_gen: v5e
topology: v5e:2x2
jax: 0.10.0
libtpu: 0.0.40
codegen_flags: <defaults>
</compile_context>

<pallas_src>
import functools

import jax
import jax.numpy as jnp
from jax import lax
from jax.experimental import pallas as pl
from jax.experimental.pallas import tpu as pltpu


_MAX_UNROLL_CG = 16   # above this, use the broadcast (group-block) fused kernel


# ----------------------------------------------------------------------------
# Kernels
# ----------------------------------------------------------------------------
def _gn_fused_rowmajor_kernel(x_ref, gamma_ref, beta_ref, o_ref, *, cg, hw, count, eps):
    """Single-pass GroupNorm on a (R, Cg*HW) block with HW % 128 == 0.

    Stats and affine are computed per 128-aligned channel segment so no
    full-block f32 temp is materialized (important for sub-f32 inputs and for
    v7x's 64 MiB VMEM).  Sums are accumulated in f32.
    """
    r = x_ref.shape[0]
    s = jnp.zeros((r, 1), jnp.float32)
    ss = jnp.zeros((r, 1), jnp.float32)
    # TODO(synk): for extremely large per-group counts (Cg*HW in the millions)
    # switch to a Welford/chunked two-moment accumulation to avoid cancellation.
    for c in range(cg):                                   # cg <= _MAX_UNROLL_CG
        lo = c * hw
        seg = x_ref[:, lo:lo + hw].astype(jnp.float32)    # (R, HW); no-op cast for f32
        s = s + jnp.sum(seg, axis=1, keepdims=True)
        ss = ss + jnp.sum(seg * seg, axis=1, keepdims=True)
    inv_cnt = 1.0 / count
    mean = s * inv_cnt
    var = jnp.maximum(ss * inv_cnt - mean * mean, 0.0)    # biased var (matches torch)
    rstd = lax.rsqrt(var + eps)
    # Fold the per-(row, channel) affine into scale/shift -> 1 mul + 1 add / element.
    scale = gamma_ref[...] * rstd                         # (R, Cg)
    shift = beta_ref[...] - mean * scale                  # (R, Cg)
    for c in range(cg):
        lo = c * hw
        seg = x_ref[:, lo:lo + hw].astype(jnp.float32)
        o_ref[:, lo:lo + hw] = (seg * scale[:, c:c + 1]
                                + shift[:, c:c + 1]).astype(o_ref.dtype)


def _gn_fused_group3d_kernel(x_ref, gamma_ref, beta_ref, o_ref, *, count, eps):
    """Single-pass GroupNorm on a (R, Cg, HW) block; Cg and HW are full array dims.

    Used when Cg is large (single broadcast affine instead of a Cg-way unroll)
    or when HW is not a multiple of 128 (Mosaic masks the lane tail, so no
    wrapper-side pad/slice HBM passes).  gamma/beta blocks are (R, Cg, 1).
    """
    xf = x_ref[...].astype(jnp.float32)                                   # (R, Cg, HW)
    s = jnp.sum(jnp.sum(xf, axis=2, keepdims=True), axis=1, keepdims=True)       # (R,1,1)
    ss = jnp.sum(jnp.sum(xf * xf, axis=2, keepdims=True), axis=1, keepdims=True)  # (R,1,1)
    inv_cnt = 1.0 / count
    mean = s * inv_cnt
    var = jnp.maximum(ss * inv_cnt - mean * mean, 0.0)
    rstd = lax.rsqrt(var + eps)
    scale = gamma_ref[...] * rstd                          # (R, Cg, 1)
    shift = beta_ref[...] - mean * scale                   # (R, Cg, 1)
    o_ref[...] = (xf * scale + shift).astype(o_ref.dtype)


def _gn_stats_kernel(x_ref, mean_ref, rstd_ref, sum_sc, ssq_sc, *, count, eps):
    """Fallback pass 1: accumulate sum/sumsq over 2-D (Rf, Dc) lane chunks."""
    j = pl.program_id(1)

    @pl.when(j == 0)
    def _():
        sum_sc[...] = jnp.zeros_like(sum_sc)
        ssq_sc[...] = jnp.zeros_like(ssq_sc)

    xf = x_ref[...].astype(jnp.float32)                    # (Rf, Dc)
    sum_sc[...] += jnp.sum(xf, axis=1, keepdims=True)
    ssq_sc[...] += jnp.sum(xf * xf, axis=1, keepdims=True)

    @pl.when(j == pl.num_programs(1) - 1)
    def _():
        # TODO(synk): Welford-style chunk merging for very large counts.
        inv_cnt = 1.0 / count
        mean = sum_sc[...] * inv_cnt
        var = jnp.maximum(ssq_sc[...] * inv_cnt - mean * mean, 0.0)
        mean_ref[...] = mean
        rstd_ref[...] = lax.rsqrt(var + eps)


def _gn_apply_kernel(x_ref, scale_ref, shift_ref, o_ref):
    """Fallback pass 2: lane-dense per-channel-row normalize+affine on (Rc, HWc)."""
    xf = x_ref[...].astype(jnp.float32)
    o_ref[...] = (xf * scale_ref[...] + shift_ref[...]).astype(o_ref.dtype)


# ----------------------------------------------------------------------------
# Tiling helpers
# ----------------------------------------------------------------------------
def _divisors(n):
    return [d for d in range(1, n + 1) if n % d == 0]


def _round_up(n, m):
    return ((n + m - 1) // m) * m


def _vmem_capacity_bytes():
    """Per-TensorCore VMEM size (64 MiB v7x, 128 MiB v5e/v6e); conservative default."""
    try:
        info = pltpu.get_tpu_info()
        cap = getattr(info, "vmem_capacity_bytes", None)
        if cap:
            return int(cap)
    except Exception:
        pass
    return 64 * 1024 * 1024   # v7x-safe floor


def _choose_fused_rows(nr, block_bytes_fn, data_bytes_fn, budget, *, require_mult8):
    """Pick a row-block R for the fused paths.

    Preference (perf review): >=4 grid steps with an even step count (so each
    megacore TC pipelines >=2 blocks) and ~1-4 MiB data blocks; then >=4 steps;
    then >=2 steps; then anything that fits the VMEM budget.
    """
    if require_mult8:
        valid = [r for r in _divisors(nr) if r % 8 == 0 or r == nr]
    else:
        valid = _divisors(nr)
    fit = [r for r in valid if block_bytes_fn(r) <= budget]
    if not fit:
        return None

    def steps(r):
        return nr // r

    tiers = [
        [r for r in fit if steps(r) >= 4 and steps(r) % 2 == 0
         and data_bytes_fn(r) <= (4 << 20)],
        [r for r in fit if steps(r) >= 4 and data_bytes_fn(r) <= (4 << 20)],
        [r for r in fit if steps(r) >= 2],
        fit,
    ]
    for tier in tiers:
        if tier:
            big = [r for r in tier if data_bytes_fn(r) >= (1 << 20)]
            # smallest R that still gives a >=1 MiB block (max steps at roofline),
            # otherwise the largest block available in this tier.
            return min(big) if big else max(tier)
    return None


def _choose_2d_tiles(nrows, ncols, per_elem, budget):
    """(rows, lane-chunk) for a 2-D pass; rows mult of 8 (or full), chunk mult of 128 (or full)."""
    valid_r = [r for r in _divisors(nrows) if r % 8 == 0 or r == nrows]
    if ncols % 128 == 0:
        valid_c = [128 * d for d in _divisors(ncols // 128)]
    else:
        valid_c = [ncols]
    best = None
    for r in valid_r:
        for c in valid_c:
            if r * c * per_elem <= budget:
                key = (r * c, c)                 # biggest block; tie-break wider lanes
                if best is None or key > best[0]:
                    best = (key, r, c)
    if best is None:
        return None
    return best[1], best[2]


# ----------------------------------------------------------------------------
# Wrapper
# ----------------------------------------------------------------------------
def group_norm(x, gamma, beta, *, num_groups=4, eps=1e-5, block_budget_bytes=None):
    """GroupNorm forward. x: (N, C, H, W) NCHW; gamma, beta: (C,)."""
    N, C, H, W = x.shape
    G = num_groups
    assert C % G == 0, "num_channels must be divisible by num_groups"
    Cg = C // G
    HW = H * W
    NR = N * G
    D = Cg * HW
    count = D
    itemsize = x.dtype.itemsize

    cap = _vmem_capacity_bytes()
    budget = block_budget_bytes if block_budget_bytes is not None else cap // 2
    vmem_limit = int(min(cap * 3 // 4, 128 * 1024 * 1024))

    lane_aligned = (HW % 128 == 0)
    use_rowmajor = lane_aligned and Cg <= _MAX_UNROLL_CG

    fused_cost = pl.CostEstimate(flops=int(6 * N * C * HW),
                                 transcendentals=int(NR),
                                 bytes_accessed=int(2 * x.size * itemsize))

    if use_rowmajor:
        # ---------------- fused path A: (NR, Cg*HW) row-major blocks ----------------
        per_elem = 4.0 * itemsize                 # in + out, each double-buffered
        if itemsize < 4:
            per_elem += 8.0 / Cg                  # per-channel-segment f32 temps
        blk_bytes = lambda r: r * D * per_elem
        dat_bytes = lambda r: r * D * itemsize
        R = _choose_fused_rows(NR, blk_bytes, dat_bytes, budget, require_mult8=True)
        if R is not None:
            gamma_rows = jnp.tile(gamma.reshape(G, Cg), (N, 1)).astype(jnp.float32)
            beta_rows = jnp.tile(beta.reshape(G, Cg), (N, 1)).astype(jnp.float32)
            x2 = x.reshape(NR, D)
            kernel = functools.partial(_gn_fused_rowmajor_kernel,
                                       cg=Cg, hw=HW, count=count, eps=eps)
            out2 = pl.pallas_call(
                kernel,
                out_shape=jax.ShapeDtypeStruct((NR, D), x.dtype),
                grid_spec=pltpu.PrefetchScalarGridSpec(
                    num_scalar_prefetch=0,
                    grid=(NR // R,),
                    in_specs=[
                        pl.BlockSpec((R, D), lambda i: (i, 0)),
                        pl.BlockSpec((R, Cg), lambda i: (i, 0)),
                        pl.BlockSpec((R, Cg), lambda i: (i, 0)),
                    ],
                    out_specs=pl.BlockSpec((R, D), lambda i: (i, 0)),
                ),
                compiler_params=pltpu.CompilerParams(
                    dimension_semantics=("parallel",),
                    vmem_limit_bytes=vmem_limit,
                ),
                cost_estimate=fused_cost,
            )(x2, gamma_rows, beta_rows)
            return out2.reshape(N, C, H, W)
    else:
        # ---------------- fused path B: (NR, Cg, HW) group blocks -------------------
        padded_row = _round_up(Cg, 8) * _round_up(HW, 128)   # real VMEM footprint/row
        per_elem = 4.0 * itemsize + 4.0                      # in/out dbl-buffered + f32 copy
        blk_bytes = lambda r: r * padded_row * per_elem
        dat_bytes = lambda r: r * Cg * HW * itemsize
        R = _choose_fused_rows(NR, blk_bytes, dat_bytes, budget, require_mult8=False)
        if R is not None:
            gamma3 = jnp.tile(gamma.reshape(G, Cg), (N, 1)).astype(jnp.float32)
            beta3 = jnp.tile(beta.reshape(G, Cg), (N, 1)).astype(jnp.float32)
            gamma3 = gamma3.reshape(NR, Cg, 1)
            beta3 = beta3.reshape(NR, Cg, 1)
            x3 = x.reshape(NR, Cg, HW)
            kernel = functools.partial(_gn_fused_group3d_kernel, count=count, eps=eps)
            out3 = pl.pallas_call(
                kernel,
                out_shape=jax.ShapeDtypeStruct((NR, Cg, HW), x.dtype),
                grid_spec=pltpu.PrefetchScalarGridSpec(
                    num_scalar_prefetch=0,
                    grid=(NR // R,),
                    in_specs=[
                        pl.BlockSpec((R, Cg, HW), lambda i: (i, 0, 0)),
                        pl.BlockSpec((R, Cg, 1), lambda i: (i, 0, 0)),
                        pl.BlockSpec((R, Cg, 1), lambda i: (i, 0, 0)),
                    ],
                    out_specs=pl.BlockSpec((R, Cg, HW), lambda i: (i, 0, 0)),
                ),
                compiler_params=pltpu.CompilerParams(
                    dimension_semantics=("parallel",),
                    vmem_limit_bytes=vmem_limit,
                ),
                cost_estimate=fused_cost,
            )(x3, gamma3, beta3)
            return out3.reshape(N, C, H, W)

    # ---------------- two-pass fallback (group block too large for VMEM) ------------
    if not lane_aligned:
        # Rare corner: huge group *and* non-128-aligned spatial size.
        # TODO(synk): masked-tail lane chunking would avoid this extra pad/slice pass.
        HWp = _round_up(HW, 128)
        xr = jnp.pad(x.reshape(N, C, HW), ((0, 0), (0, 0), (0, HWp - HW)))
    else:
        HWp = HW
        xr = x.reshape(N, C, HW)
    Dp = Cg * HWp

    # Pass 1: stats on 2-D (NR, Dp) lane chunks -> sublanes full even for Cg < 8.
    x2 = xr.reshape(NR, Dp)
    stats_tiles = _choose_2d_tiles(NR, Dp, 2.0 * itemsize + 8.0, budget)
    apply_tiles = _choose_2d_tiles(N * C, HWp,
                                   4.0 * itemsize + (0.0 if itemsize >= 4 else 4.0),
                                   budget)
    if stats_tiles is None or apply_tiles is None:
        raise NotImplementedError("GroupNorm tile does not fit the VMEM budget")
    Rf, Dc = stats_tiles
    Rc, HWc = apply_tiles

    stats_kernel = functools.partial(_gn_stats_kernel, count=count, eps=eps)
    mean, rstd = pl.pallas_call(
        stats_kernel,
        out_shape=(jax.ShapeDtypeStruct((NR, 1), jnp.float32),
                   jax.ShapeDtypeStruct((NR, 1), jnp.float32)),
        grid_spec=pltpu.PrefetchScalarGridSpec(
            num_scalar_prefetch=0,
            grid=(NR // Rf, Dp // Dc),
            in_specs=[pl.BlockSpec((Rf, Dc), lambda i, j: (i, j))],
            out_specs=[pl.BlockSpec((Rf, 1), lambda i, j: (i, 0)),
                       pl.BlockSpec((Rf, 1), lambda i, j: (i, 0))],
            scratch_shapes=[pltpu.VMEM((Rf, 1), jnp.float32),
                            pltpu.VMEM((Rf, 1), jnp.float32)],
        ),
        compiler_params=pltpu.CompilerParams(
            dimension_semantics=("parallel", "arbitrary"),
            vmem_limit_bytes=vmem_limit,
        ),
        cost_estimate=pl.CostEstimate(flops=int(3 * N * C * HW),
                                      transcendentals=int(NR),
                                      bytes_accessed=int(x.size * itemsize)),
    )(x2)

    # Tiny XLA ops: expand per-group stats to per-channel rows and fold the affine.
    gamma_ch = jnp.tile(gamma, (N,)).reshape(N * C, 1).astype(jnp.float32)
    beta_ch = jnp.tile(beta, (N,)).reshape(N * C, 1).astype(jnp.float32)
    mean_ch = jnp.repeat(mean.reshape(N, G), Cg, axis=1).reshape(N * C, 1)
    rstd_ch = jnp.repeat(rstd.reshape(N, G), Cg, axis=1).reshape(N * C, 1)
    scale_ch = gamma_ch * rstd_ch
    shift_ch = beta_ch - mean_ch * scale_ch

    # Pass 2: lane-dense apply on (N*C, HWp) channel rows.
    xrows = xr.reshape(N * C, HWp)
    out_rows = pl.pallas_call(
        _gn_apply_kernel,
        out_shape=jax.ShapeDtypeStruct((N * C, HWp), x.dtype),
        grid_spec=pltpu.PrefetchScalarGridSpec(
            num_scalar_prefetch=0,
            grid=(N * C // Rc, HWp // HWc),
            in_specs=[
                pl.BlockSpec((Rc, HWc), lambda i, j: (i, j)),
                pl.BlockSpec((Rc, 1), lambda i, j: (i, 0)),
                pl.BlockSpec((Rc, 1), lambda i, j: (i, 0)),
            ],
            out_specs=pl.BlockSpec((Rc, HWc), lambda i, j: (i, j)),
        ),
        compiler_params=pltpu.CompilerParams(
            dimension_semantics=("parallel", "parallel"),
            vmem_limit_bytes=vmem_limit,
        ),
        cost_estimate=pl.CostEstimate(flops=int(2 * N * C * HW),
                                      transcendentals=0,
                                      bytes_accessed=int(2 * x.size * itemsize)),
    )(xrows, scale_ch, shift_ch)

    out = out_rows.reshape(N, C, HWp)
    if HWp != HW:
        out = out[:, :, :HW]
    return out.reshape(N, C, H, W)


def _group_norm_ref(x, gamma, beta, *, num_groups=4, eps=1e-5):
    """Plain-JAX reference (matches torch.nn.GroupNorm: biased variance)."""
    N, C, H, W = x.shape
    G = num_groups
    xg = x.reshape(N, G, -1).astype(jnp.float32)
    mean = jnp.mean(xg, axis=2, keepdims=True)
    var = jnp.mean((xg - mean) ** 2, axis=2, keepdims=True)
    y = (xg - mean) * lax.rsqrt(var + eps)
    y = y.reshape(N, C, H, W)
    return (y * gamma[None, :, None, None] + beta[None, :, None, None]).astype(x.dtype)


if __name__ == "__main__":
    key = jax.random.PRNGKey(0)
    kx, kg, kb, kx2, kx3, kx4 = jax.random.split(key, 6)
    num_groups = 4

    def check(x, gamma, beta, **kw):
        out = jax.block_until_ready(group_norm(x, gamma, beta, num_groups=num_groups,
                                               eps=1e-5, **kw))
        ref = _group_norm_ref(x, gamma, beta, num_groups=num_groups, eps=1e-5)
        assert out.shape == x.shape
        assert jnp.allclose(out, ref, atol=1e-4, rtol=1e-4), "GroupNorm mismatch"

    # --- Test 1: fused row-major path (N*G = 16 rows -> 8-row blocks, 2 steps) ---
    N, C, H, W = 4, 4, 16, 16
    x = jax.random.normal(kx, (N, C, H, W), dtype=jnp.float32)
    gamma = 1.0 + 0.1 * jax.random.normal(kg, (C,), dtype=jnp.float32)
    beta = 0.1 * jax.random.normal(kb, (C,), dtype=jnp.float32)
    check(x, gamma, beta)

    # --- Test 2: force the two-pass fallback with a tiny block budget ---
    N2, C2 = 2, 8
    x2 = jax.random.normal(kx2, (N2, C2, H, W), dtype=jnp.float32)
    gamma2 = jnp.linspace(0.5, 1.5, C2, dtype=jnp.float32)
    beta2 = jnp.linspace(-0.2, 0.2, C2, dtype=jnp.float32)
    check(x2, gamma2, beta2, block_budget_bytes=48_000)

    # --- Test 3: fused group-block path for large Cg (C=128, G=4 -> Cg=32) ---
    N3, C3 = 2, 128
    x3 = jax.random.normal(kx3, (N3, C3, H, W), dtype=jnp.float32)
    gamma3 = 1.0 + 0.05 * jnp.cos(jnp.arange(C3, dtype=jnp.float32))
    beta3 = 0.05 * jnp.sin(jnp.arange(C3, dtype=jnp.float32))
    check(x3, gamma3, beta3)

    # --- Test 4: non-128-aligned spatial size (masked lane tail, no pad pass) ---
    N4, C4, H4, W4 = 2, 8, 10, 10
    x4 = jax.random.normal(kx4, (N4, C4, H4, W4), dtype=jnp.float32)
    gamma4 = jnp.linspace(0.8, 1.2, C4, dtype=jnp.float32)
    beta4 = jnp.linspace(-0.1, 0.1, C4, dtype=jnp.float32)
    check(x4, gamma4, beta4)

    print("KERNEL_OK")
</pallas_src>

<mosaic_0001>
module attributes {stable_mosaic.version = 11 : i64} {
  func.func @_gn_fused_rowmajor_kernel(%arg0: i32, %arg1: memref<8x256xf32, #tpu.memory_space<vmem>>, %arg2: memref<8x1xf32, #tpu.memory_space<vmem>>, %arg3: memref<8x1xf32, #tpu.memory_space<vmem>>, %arg4: memref<8x256xf32, #tpu.memory_space<vmem>>) attributes {dimension_semantics = [#tpu.dimension_semantics<parallel>], iteration_bounds = array<i64: 2>, scalar_prefetch = 0 : i64, scratch_operands = 0 : i64, tpu.core_type = #tpu.core_type<tc>, window_params = [{transform_indices = @transform_0, window_bounds = array<i64: 8, 256>}, {transform_indices = @transform_1, window_bounds = array<i64: 8, 1>}, {transform_indices = @transform_2, window_bounds = array<i64: 8, 1>}, {transform_indices = @transform_3, window_bounds = array<i64: 8, 256>}]} {
    %cst = arith.constant 0.000000e+00 : f32
    %0 = vector.broadcast %cst : f32 to vector<8x1xf32>
    %cst_0 = arith.constant 0.000000e+00 : f32
    %1 = vector.broadcast %cst_0 : f32 to vector<8x1xf32>
    %c0 = arith.constant 0 : index
    %c0_1 = arith.constant 0 : index
    %2 = vector.load %arg1[%c0, %c0_1] : memref<8x256xf32, #tpu.memory_space<vmem>>, vector<8x256xf32>
    %cst_2 = arith.constant dense<0.000000e+00> : vector<8xf32>
    %3 = vector.multi_reduction <add>, %2, %cst_2 [1] : vector<8x256xf32> to vector<8xf32>
    %4 = vector.shape_cast %3 : vector<8xf32> to vector<8x1xf32>
    %5 = arith.addf %0, %4 : vector<8x1xf32>
    %6 = arith.mulf %2, %2 : vector<8x256xf32>
    %cst_3 = arith.constant dense<0.000000e+00> : vector<8xf32>
    %7 = vector.multi_reduction <add>, %6, %cst_3 [1] : vector<8x256xf32> to vector<8xf32>
    %8 = vector.shape_cast %7 : vector<8xf32> to vector<8x1xf32>
    %9 = arith.addf %1, %8 : vector<8x1xf32>
    %cst_4 = arith.constant 3.906250e-03 : f32
    %10 = vector.broadcast %cst_4 : f32 to vector<8x1xf32>
    %11 = arith.mulf %5, %10 : vector<8x1xf32>
    %cst_5 = arith.constant 3.906250e-03 : f32
    %12 = vector.broadcast %cst_5 : f32 to vector<8x1xf32>
    %13 = arith.mulf %9, %12 : vector<8x1xf32>
    %14 = arith.mulf %11, %11 : vector<8x1xf32>
    %15 = arith.subf %13, %14 : vector<8x1xf32>
    %cst_6 = arith.constant 0.000000e+00 : f32
    %16 = vector.broadcast %cst_6 : f32 to vector<8x1xf32>
    %17 = arith.maximumf %15, %16 : vector<8x1xf32>
    %cst_7 = arith.constant 9.99999974E-6 : f32
    %18 = vector.broadcast %cst_7 : f32 to vector<8x1xf32>
    %19 = arith.addf %17, %18 : vector<8x1xf32>
    %20 = math.rsqrt %19 : vector<8x1xf32>
    %c0_8 = arith.constant 0 : index
    %c0_9 = arith.constant 0 : index
    %21 = vector.load %arg2[%c0_8, %c0_9] : memref<8x1xf32, #tpu.memory_space<vmem>>, vector<8x1xf32>
    %22 = arith.mulf %21, %20 : vector<8x1xf32>
    %c0_10 = arith.constant 0 : index
    %c0_11 = arith.constant 0 : index
    %23 = vector.load %arg3[%c0_10, %c0_11] : memref<8x1xf32, #tpu.memory_space<vmem>>, vector<8x1xf32>
    %24 = arith.mulf %11, %22 : vector<8x1xf32>
    %25 = arith.subf %23, %24 : vector<8x1xf32>
    %c0_12 = arith.constant 0 : index
    %c0_13 = arith.constant 0 : index
    %26 = vector.load %arg1[%c0_12, %c0_13] : memref<8x256xf32, #tpu.memory_space<vmem>>, vector<8x256xf32>
    %27 = vector.broadcast %22 : vector<8x1xf32> to vector<8x256xf32>
    %28 = arith.mulf %26, %27 : vector<8x256xf32>
    %29 = vector.broadcast %25 : vector<8x1xf32> to vector<8x256xf32>
    %30 = arith.addf %28, %29 : vector<8x256xf32>
    %c0_14 = arith.constant 0 : index
    %c0_15 = arith.constant 0 : index
    %31 = vector.load %arg4[%c0_14, %c0_15] : memref<8x256xf32, #tpu.memory_space<vmem>>, vector<8x256xf32>
    tpu.vector_store %arg4[%c0_14, %c0_15], %30 {strides = array<i32>} : memref<8x256xf32, #tpu.memory_space<vmem>>, vector<8x256xf32>,
    return
  }
  func.func @transform_0(%arg0: i32) -> (i32, i32) {
    %c0_i32 = arith.constant 0 : i32
    %c0_i32_0 = arith.constant 0 : i32
    return %arg0, %c0_i32 : i32, i32
  }
  func.func @transform_1(%arg0: i32) -> (i32, i32) {
    %c0_i32 = arith.constant 0 : i32
    %c0_i32_0 = arith.constant 0 : i32
    return %arg0, %c0_i32 : i32, i32
  }
  func.func @transform_2(%arg0: i32) -> (i32, i32) {
    %c0_i32 = arith.constant 0 : i32
    %c0_i32_0 = arith.constant 0 : i32
    return %arg0, %c0_i32 : i32, i32
  }
  func.func @transform_3(%arg0: i32) -> (i32, i32) {
    %c0_i32 = arith.constant 0 : i32
    %c0_i32_0 = arith.constant 0 : i32
    return %arg0, %c0_i32 : i32, i32
  }
}

</mosaic_0001>

<llo_original>
// kernel: tpu_custom_call.1
$region0: #{tpu_custom_call.1}
  #allocation0 [shape = 'u32[]', space=smem, size = 0x4, offset = 0x4, fixed_abs, tag = 'smem constant byte address 0x4 - core index']
  #allocation1 [shape = 'u32[72,128]{1,0:T(1,128)}', space=vmem, size = 0x9000, scoped, tag = 'internal scratch']
  %s0 = inlined_call_operand.vmem [shape: f32[16,256], index: 0, kind: input, shape index: {}]
  %s1 = inlined_call_operand.vmem [shape: f32[16,1], index: 1, kind: input, shape index: {}]
  %s2 = inlined_call_operand.vmem [shape: f32[16,1], index: 2, kind: input, shape index: {}]
  %s3 = inlined_call_operand.hbm [shape: f32[16,256], index: 3, kind: output, shape index: {}]
  %s4 = sld [smem:[#allocation0]]
  $region45: #{tpu_custom_call.1} parent=0
    _
  %s6 = ssub.s32 1, %s4
  %s7 = scalar_select 0, %s6, %s4
  $region1: #{tpu_custom_call.1} parent=0
    #allocation2 [shape = 'u8[16384]{0}', space=vmem, size = 0x4000, scoped, tag = 'output window, operand 0']
    #allocation3 [shape = 's32[2]{0}', space=sflag, size = 0x8, scoped, tag = 'scoped memory for tpu_custom_call.1']
    %8 = vsyncpa [#allocation3], 0
    %s9 = scalar_lea.sflag [#allocation3], 1
    %10 = vsyncpa %s9, 0
    loop: start=0, step=1, limit=4
    $region2: #{tpu_custom_call.1} parent=1 // loop_pre_header
      _
    $region3: #{tpu_custom_call.1} parent=1 // loop_header
      %s12 = sphi 0, %s16
      %p13 = scmp.ge.s32.totalorder %s12, 4
      %s22 = sphi 0, %s24
      %s25 = sphi 0, %s22
      %s26 = sphi 0, %s25
      %s42 = sphi 0, %s26
      %s48 = sphi 0, %s50
      %s51 = sphi 0, %s48
      %s52 = sphi 0, %s51
      %s68 = sphi 0, %s52
      %s74 = sphi 0, %s76
      %s77 = sphi 0, %s74
      %s78 = sphi 0, %s77
      %s94 = sphi 0, %s78
      %s100 = sphi 0, %s102
      %s103 = sphi 0, %s100
      %s104 = sphi 0, %s103
      %s120 = sphi 0, %s104
    $region4: #{tpu_custom_call.1} parent=1 // loop_header_branch
      %15 = sbr.rel (%p13) target = $region8
    $region5: #{tpu_custom_call.1} parent=1 // loop_body
      %s17 = ssub.s32 %s12, 1
      %s18 = ssub.s32 %s12, 2
      %s19 = sadd.s32 %s12, 1
      %s20 = ssub.s32 %s12, %s19
      %p21 = scmp.eq.s32.totalorder %s20, 0
      %s23 = sadd.s32 %s22, 1
      %s24 = scalar_select %p21, %s22, %s23
      %p27 = pneg %p21
      %p28 = scmp.eq.s32.totalorder %s12, 1
      %p29 = por %p27, %p28
      %p30 = scmp.ne.s32.totalorder %s22, %s25
      %p31 = scmp.eq.s32.totalorder %s12, 0
      %p32 = por %p30, %p31
      %p33 = scmp.ne.s32.totalorder %s22, %s25
      %p34 = scmp.eq.s32.totalorder %s17, 1
      %p35 = por %p33, %p34
      %p36 = scmp.ne.s32.totalorder %s25, %s26
      %p37 = scmp.eq.s32.totalorder %s17, 0
      %p38 = por %p36, %p37
      %p39 = scmp.ne.s32.totalorder %s25, %s26
      %p40 = scmp.eq.s32.totalorder %s18, 1
      %p41 = por %p39, %p40
      %p43 = scmp.ne.s32.totalorder %s26, %s42
      %p44 = scmp.eq.s32.totalorder %s18, 0
      %p45 = por %p43, %p44
      %s46 = ssub.s32 %s12, %s19
      %p47 = scmp.eq.s32.totalorder %s46, 0
      %s49 = sadd.s32 %s48, 1
      %s50 = scalar_select %p47, %s48, %s49
      %p53 = pneg %p47
      %p54 = scmp.eq.s32.totalorder %s12, 1
      %p55 = por %p53, %p54
      %p56 = scmp.ne.s32.totalorder %s48, %s51
      %p57 = scmp.eq.s32.totalorder %s12, 0
      %p58 = por %p56, %p57
      %p59 = scmp.ne.s32.totalorder %s48, %s51
      %p60 = scmp.eq.s32.totalorder %s17, 1
      %p61 = por %p59, %p60
      %p62 = scmp.ne.s32.totalorder %s51, %s52
      %p63 = scmp.eq.s32.totalorder %s17, 0
      %p64 = por %p62, %p63
      %p65 = scmp.ne.s32.totalorder %s51, %s52
      %p66 = scmp.eq.s32.totalorder %s18, 1
      %p67 = por %p65, %p66
      %p69 = scmp.ne.s32.totalorder %s52, %s68
      %p70 = scmp.eq.s32.totalorder %s18, 0
      %p71 = por %p69, %p70
      %s72 = ssub.s32 %s12, %s19
      %p73 = scmp.eq.s32.totalorder %s72, 0
      %s75 = sadd.s32 %s74, 1
      %s76 = scalar_select %p73, %s74, %s75
      %p79 = pneg %p73
      %p80 = scmp.eq.s32.totalorder %s12, 1
      %p81 = por %p79, %p80
      %p82 = scmp.ne.s32.totalorder %s74, %s77
      %p83 = scmp.eq.s32.totalorder %s12, 0
      %p84 = por %p82, %p83
      %p85 = scmp.ne.s32.totalorder %s74, %s77
      %p86 = scmp.eq.s32.totalorder %s17, 1
      %p87 = por %p85, %p86
      %p88 = scmp.ne.s32.totalorder %s77, %s78
      %p89 = scmp.eq.s32.totalorder %s17, 0
      %p90 = por %p88, %p89
      %p91 = scmp.ne.s32.totalorder %s77, %s78
      %p92 = scmp.eq.s32.totalorder %s18, 1
      %p93 = por %p91, %p92
      %p95 = scmp.ne.s32.totalorder %s78, %s94
      %p96 = scmp.eq.s32.totalorder %s18, 0
      %p97 = por %p95, %p96
      %s98 = ssub.s32 %s12, %s19
      %p99 = scmp.eq.s32.totalorder %s98, 0
      %s101 = sadd.s32 %s100, 1
      %s102 = scalar_select %p99, %s100, %s101
      %p105 = pneg %p99
      %p106 = scmp.eq.s32.totalorder %s12, 1
      %p107 = por %p105, %p106
      %p108 = scmp.ne.s32.totalorder %s100, %s103
      %p109 = scmp.eq.s32.totalorder %s12, 0
      %p110 = por %p108, %p109
      %p111 = scmp.ne.s32.totalorder %s100, %s103
      %p112 = scmp.eq.s32.totalorder %s17, 1
      %p113 = por %p111, %p112
      %p114 = scmp.ne.s32.totalorder %s103, %s104
      %p115 = scmp.eq.s32.totalorder %s17, 0
      %p116 = por %p114, %p115
      %p117 = scmp.ne.s32.totalorder %s103, %s104
      %p118 = scmp.eq.s32.totalorder %s18, 1
      %p119 = por %p117, %p118
      %p121 = scmp.ne.s32.totalorder %s104, %s120
      %p122 = scmp.eq.s32.totalorder %s18, 0
      %p123 = por %p121, %p122
      %p124 = scmp.le.s32.totalorder 1, %s12
      %p125 = scmp.lt.s32.totalorder %s12, 3
      %p126 = pnand %p124, %p125
      %p127 = pneg %p126
      // Predicated region
      $region9: #{tpu_custom_call.1} parent=5 // pred_check
        _
      $region10: #{tpu_custom_call.1} parent=5 // pred_check_branch
        %129 = sbr.rel (%p126) target = $region12
      $region11: #{tpu_custom_call.1} parent=5 // pred_region
        %s130 = ssub.s32 %s12, 1
      $region12: #{tpu_custom_call.1} parent=5 // pred_fallthru
        _
      %p131 = scmp.lt.s32.totalorder %s12, 2
      // Predicated region
      $region13: #{tpu_custom_call.1} parent=5 // pred_check
        %p132 = pneg %p131
      $region14: #{tpu_custom_call.1} parent=5 // pred_check_branch
        %134 = sbr.rel (%p132) target = $region16
      $region15: #{tpu_custom_call.1} parent=5 // pred_region
        // Predicated region
        $region17: #{tpu_custom_call.1} parent=15 // pred_check
          %p135 = pneg %p32
        $region18: #{tpu_custom_call.1} parent=15 // pred_check_branch
          %137 = sbr.rel (%p135) target = $region20
        $region19: #{tpu_custom_call.1} parent=15 // pred_region
          %p138 = scmp.lt.s32.totalorder %s12, 1
          %s139 = scalar_select %p138, %s12, 1
          %s140 = smul.addr %s139, 2
          %s141 = smul.addr %s140, 8
          %s142 = scalar_lea.vmem %s0, %s141
        $region20: #{tpu_custom_call.1} parent=15 // pred_fallthru
          _
        // Predicated region
        $region21: #{tpu_custom_call.1} parent=15 // pred_check
          %p143 = pneg %p58
        $region22: #{tpu_custom_call.1} parent=15 // pred_check_branch
          %145 = sbr.rel (%p143) target = $region24
        $region23: #{tpu_custom_call.1} parent=15 // pred_region
          %p146 = scmp.lt.s32.totalorder %s12, 1
          %s147 = scalar_select %p146, %s12, 1
          %s148 = smul.addr %s147, 8
          %s149 = scalar_lea.vmem %s1, %s148
        $region24: #{tpu_custom_call.1} parent=15 // pred_fallthru
          _
        // Predicated region
        $region25: #{tpu_custom_call.1} parent=15 // pred_check
          %p150 = pneg %p84
        $region26: #{tpu_custom_call.1} parent=15 // pred_check_branch
          %152 = sbr.rel (%p150) target = $region28
        $region27: #{tpu_custom_call.1} parent=15 // pred_region
          %p153 = scmp.lt.s32.totalorder %s12, 1
          %s154 = scalar_select %p153, %s12, 1
          %s155 = smul.addr %s154, 8
          %s156 = scalar_lea.vmem %s2, %s155
        $region28: #{tpu_custom_call.1} parent=15 // pred_fallthru
          _
      $region16: #{tpu_custom_call.1} parent=5 // pred_fallthru
        _
      %p157 = scmp.le.s32.totalorder 1, %s12
      %p158 = scmp.lt.s32.totalorder %s12, 3
      %p159 = pnand %p157, %p158
      %p160 = pneg %p159
      // Predicated region
      $region29: #{tpu_custom_call.1} parent=5 // pred_check
        _
      $region30: #{tpu_custom_call.1} parent=5 // pred_check_branch
        %162 = sbr.rel (%p159) target = $region32
      $region31: #{tpu_custom_call.1} parent=5 // pred_region
        %s163 = ssub.s32 %s12, 1
        %p164 = scmp.lt.s32.totalorder %s17, 1
        %s165 = scalar_select %p164, %s17, 1
        %s166 = smul.addr %s165, 2
        %s167 = smul.addr %s166, 8
        %s168 = scalar_lea.vmem %s0, %s167
        %p169 = pneg %p38
        %p170 = pneg %p35
        %p171 = scmp.lt.s32.totalorder %s17, 1
        %s172 = scalar_select %p171, %s17, 1
        %s173 = smul.addr %s172, 8
        %s174 = scalar_lea.vmem %s1, %s173
        %p175 = pneg %p64
        %p176 = pneg %p61
        %p177 = scmp.lt.s32.totalorder %s17, 1
        %s178 = scalar_select %p177, %s17, 1
        %s179 = smul.addr %s178, 8
        %s180 = scalar_lea.vmem %s2, %s179
        %p181 = pneg %p90
        %p182 = pneg %p87
        %p183 = pneg %p116
        %p184 = pneg %p113
        %s185 = sand.u32 %s103, 1
        %s186 = scalar_lea.sflag [#allocation3], %s185
        %s187 = sand.u32 %s103, 1
        %s188 = smul.addr %s187, 16
        %s189 = scalar_lea.vmem [#allocation2], %s188
        %p190 = scmp.lt.s32.totalorder %s17, 1
        %s191 = scalar_select %p190, %s17, 1
        %s192 = smul.addr %s191, 2
        %s193 = smul.addr %s192, 8
        %s194 = scalar_lea.vmem %s0, %s193
        %p195 = scmp.lt.s32.totalorder %s17, 1
        %s196 = scalar_select %p195, %s17, 1
        %s197 = smul.addr %s196, 8
        %s198 = scalar_lea.vmem %s1, %s197
        %p199 = scmp.lt.s32.totalorder %s17, 1
        %s200 = scalar_select %p199, %s17, 1
        %s201 = smul.addr %s200, 8
        %s202 = scalar_lea.vmem %s2, %s201
        %v203 = vld [vmem:[%s194] sm:$0xff]
        %v204 = vld [vmem:[%s194 + $0x8] sm:$0xff]
        %v205 = vadd.f32 %v203, %v204
        %206 = vadd.xlane.f32.xlu0 %v205
        %v207 = vpop.xlane.xlu0 %206
        %v208 = vadd.f32 %v207, 0.0
        %v209 = vmul.f32 %v203, %v203
        %v210 = vmul.f32 %v204, %v204
        %v211 = vadd.f32 %v209, %v210
        %212 = vadd.xlane.f32.xlu0 %v211
        %v213 = vpop.xlane.xlu0 %212
        %v214 = vadd.f32 %v213, 0.0
        %v215 = vmul.f32 %v208, 0.00390625
        %v216 = vmul.f32 %v214, 0.00390625
        %v217 = vmul.f32 %v215, %v215
        %v218 = vsub.f32 %v216, %v217
        %v219 = vmax.f32 %v218, 0.0
        %v220 = vadd.f32 %v219, 1e-05
        %v221 = vrsqrt.pop %v220
        %v222 = vmul.f32 %v221, %v220
        %v223 = vmul.f32 %v222, %v221
        %v224 = vmul.f32 0.5, %v223
        %v225 = vsub.f32 1.5, %v224
        %v226 = vmul.f32 %v221, %v225
        %vm227 = vweird.f32 %v220
        %vm228 = vweird.f32 %v221
        %vm229 = vmor %vm227, %vm228
        %v230 = vsel %vm229, %v221, %v226
        %v231 = vld [vmem:[%s198] sm:$0xff]
        %v232 = vmul.f32 %v231, %v230
        %v233 = vld [vmem:[%s202] sm:$0xff]
        %v234 = vmul.f32 %v215, %v232
        %v235 = vsub.f32 %v233, %v234
        %237 = vset.pattern.permute.xlu0 0
        %238 = vperm.xlu0 %237, %v232
        %v239 = vpop.permute.xlu0 %238
        %v241 = vmul.f32 %v203, %v239
        %v242 = vmul.f32 %v204, %v239
        %244 = vset.pattern.permute.xlu0 0
        %245 = vperm.xlu0 %244, %v235
        %v246 = vpop.permute.xlu0 %245
        %v248 = vadd.f32 %v241, %v246
        %v249 = vadd.f32 %v242, %v246
        %250 = vst [vmem:[%s189] sm:$0xff] %v248
        %251 = vst [vmem:[%s189 + $0x8] sm:$0xff] %v249
        %s252 = sand.u32 %s103, 1
        %s253 = scalar_lea.sflag [#allocation3], %s252
        %s254 = sand.u32 %s103, 1
        %s255 = smul.addr %s254, 16
        %s256 = scalar_lea.vmem [#allocation2], %s255
        // Predicated region
        $region33: #{tpu_custom_call.1} parent=31 // pred_check
          %p257 = pneg %p113
        $region34: #{tpu_custom_call.1} parent=31 // pred_check_branch
          %259 = sbr.rel (%p257) target = $region36
        $region35: #{tpu_custom_call.1} parent=31 // pred_region
          %261 = vsyncadd %s253, 0
          %s262 = smul.addr %s17, 2
          %s263 = smul.addr %s262, 8
          %s264 = scalar_lea.hbm %s3, %s263
          %s266 = sshll.u32 %s256, 4
          %s267 = int_to_ptr.vmem [resolvable:$true] %s266
          %s268 = sshll.u32 %s264, 4
          %s269 = int_to_ptr.hbm [resolvable:$true] %s268
          %271 = dma.vmem_to_hbm [thread:$0]  %s267, 256, %s269, %s253
        $region36: #{tpu_custom_call.1} parent=31 // pred_fallthru
          _
      $region32: #{tpu_custom_call.1} parent=5 // pred_fallthru
        _
      %p272 = scmp.le.s32.totalorder 2, %s12
      // Predicated region
      $region37: #{tpu_custom_call.1} parent=5 // pred_check
        %p273 = pneg %p272
      $region38: #{tpu_custom_call.1} parent=5 // pred_check_branch
        %275 = sbr.rel (%p273) target = $region40
      $region39: #{tpu_custom_call.1} parent=5 // pred_region
        %s276 = ssub.s32 %s12, 2
        // Predicated region
        $region41: #{tpu_custom_call.1} parent=39 // pred_check
          %p277 = pneg %p119
        $region42: #{tpu_custom_call.1} parent=39 // pred_check_branch
          %279 = sbr.rel (%p277) target = $region44
        $region43: #{tpu_custom_call.1} parent=39 // pred_region
          %s280 = sand.u32 %s104, 1
          %s281 = scalar_lea.sflag [#allocation3], %s280
          %s282 = sand.u32 %s104, 1
          %s283 = smul.addr %s282, 16
          %s284 = scalar_lea.vmem [#allocation2], %s283
          %286 = dma.done %s281, 256
        $region44: #{tpu_custom_call.1} parent=39 // pred_fallthru
          _
      $region40: #{tpu_custom_call.1} parent=5 // pred_fallthru
        _
    $region6: #{tpu_custom_call.1} parent=1 // loop_footer
      %s16 = sadd.s32 1, %s12
    $region7: #{tpu_custom_call.1} parent=1 // loop_footer_branch
      %11 = sbr.rel target = $region3
    $region8: #{tpu_custom_call.1} parent=1 // loop_exit
      _
    %287 = vsyncpa [#allocation3], 1
    %s288 = scalar_lea.sflag [#allocation3], 1
    %289 = vsyncpa %s288, 1

</llo_original>
